<compile_context>
chip_gen: v5e
topology: v5e:2x2
jax: 0.10.0
libtpu: 0.0.40
codegen_flags: <defaults>
</compile_context>

<pallas_src>
import jax
import jax.numpy as jnp
from jax.experimental import pallas as pl
from jax.experimental.pallas import tpu as pltpu


_TARGET_BLOCK_BYTES = 6 * 1024 * 1024   # per live block; x4 buffers ~ 24 MiB VMEM
_VMEM_LIMIT_BYTES = 32 * 1024 * 1024    # explicit: > v5e's 16 MiB default, <= v7x scoped
_LANE_CAP = 8192                        # max lanes per block (multiple of 128)


def _chomp_kernel(x_ref, o_ref):
    # Column-tiled path: in/out blocks are identical -> the slice below is a
    # full-extent no-op and this is a pure pipelined copy.
    # Full-row path: static Ref-view slice keeps only the leading L_out columns
    # (the chomped tail never reaches the output).
    o_ref[...] = x_ref[:, : o_ref.shape[-1]]


def _round_down(x: int, m: int) -> int:
    return (x // m) * m


def _pick_rows(nc: int, row_bytes: int, sub: int, target_bytes: int) -> int:
    """Largest sublane-multiple row count within the byte budget (no row cap)."""
    budget_rows = max(sub, target_bytes // max(row_bytes, 1))
    if nc <= budget_rows:
        return nc                        # full-dim rows: always layout-legal
    return max(sub, _round_down(budget_rows, sub))


def chomp1d(x: jnp.ndarray, chomp_size: int, *,
            target_block_bytes: int = _TARGET_BLOCK_BYTES,
            vmem_limit_bytes: int = _VMEM_LIMIT_BYTES) -> jnp.ndarray:
    """Pallas Chomp1d: returns x[:, :, :-chomp_size] for x of shape (N, C, L)."""
    assert chomp_size > 0, "chomp_size must be positive"
    n, c, l = x.shape
    l_out = l - chomp_size
    assert l_out > 0, "chomp_size must be smaller than the length dimension"

    nc = n * c
    x2 = x.reshape(nc, l)                 # flatten batch*channel rows (free in XLA)
    itemsize = jnp.dtype(x.dtype).itemsize
    sub = max(8, 32 // itemsize)          # sublane multiple: 8 f32 / 16 bf16 / 32 int8

    # Full-row path whenever even a minimal (sub, L) block fits the budget, or
    # when L_out is too small to lane-tile.  (Assumes chomp_size << L, as in TCN.)
    full_row_fits = sub * l * itemsize <= target_block_bytes

    if l_out < 128 or full_row_fits:
        # Full-row blocks: contiguous in/out DMA per step; chomp via Ref slice.
        r = _pick_rows(nc, l * itemsize, sub, target_block_bytes)
        grid = (pl.cdiv(nc, r),)
        in_specs = [pl.BlockSpec((r, l), lambda i: (i, 0))]
        out_specs = pl.BlockSpec((r, l_out), lambda i: (i, 0))
        dims = ("parallel",)
    else:
        # Very long rows: lane-dense column tiling; chomp purely via BlockSpec
        # windows (identical in/out blocks).  Grow TL first, then rows.
        lane_budget = max(128, _round_down(target_block_bytes // (sub * itemsize), 128))
        tl_cap = min(_round_down(l_out, 128), lane_budget, _LANE_CAP)
        tl = tl_cap
        cand = tl_cap
        while cand >= max(128, tl_cap // 2):   # prefer a TL dividing L_out (no ragged edge)
            if l_out % cand == 0:
                tl = cand
                break
            cand -= 128
        r = _pick_rows(nc, tl * itemsize, sub, target_block_bytes)
        grid = (pl.cdiv(nc, r), pl.cdiv(l_out, tl))
        in_specs = [pl.BlockSpec((r, tl), lambda i, j: (i, j))]
        out_specs = pl.BlockSpec((r, tl), lambda i, j: (i, j))
        dims = ("parallel", "parallel")

    out2 = pl.pallas_call(
        _chomp_kernel,
        out_shape=jax.ShapeDtypeStruct((nc, l_out), x.dtype),
        grid_spec=pltpu.PrefetchScalarGridSpec(
            num_scalar_prefetch=0,
            grid=grid,
            in_specs=in_specs,
            out_specs=out_specs,
        ),
        compiler_params=pltpu.CompilerParams(
            dimension_semantics=dims,
            vmem_limit_bytes=vmem_limit_bytes,
        ),
        cost_estimate=pl.CostEstimate(
            flops=0,
            transcendentals=0,
            bytes_accessed=int(nc * (l + l_out) * itemsize),
        ),
    )(x2)
    return out2.reshape(n, c, l_out)


if __name__ == "__main__":
    key = jax.random.PRNGKey(0)
    k1, k2, k3, k4 = jax.random.split(key, 4)

    # 1) Small shape consistent with TCN Chomp1d usage (forced full-row path, L_out < 128).
    N, C, L = 2, 4, 16
    chomp_size = 2
    x = jax.random.normal(k1, (N, C, L), dtype=jnp.float32)
    out = jax.block_until_ready(chomp1d(x, chomp_size))
    ref = x[:, :, :-chomp_size]
    assert out.shape == (N, C, L - chomp_size), out.shape
    assert out.dtype == x.dtype
    assert jnp.array_equal(out, ref), "Pallas Chomp1d mismatch (small-L path)"

    # 2) Full-row fast path with L_out >= 128 (the common TCN regime).
    x2 = jax.random.normal(k2, (2, 8, 384), dtype=jnp.float32)
    out2 = jax.block_until_ready(chomp1d(x2, 4))
    assert out2.shape == (2, 8, 380), out2.shape
    assert jnp.array_equal(out2, x2[:, :, :-4]), "Pallas Chomp1d mismatch (full-row path)"

    # 3) Column-tiled path with a ragged edge block (L_out % TL != 0) and an input
    #    window extending past L itself, forced via a tiny byte budget.
    x3 = jax.random.normal(k3, (2, 8, 300), dtype=jnp.float32)
    out3 = jax.block_until_ready(chomp1d(x3, 4, target_block_bytes=4096))
    assert out3.shape == (2, 8, 296), out3.shape
    assert jnp.array_equal(out3, x3[:, :, :-4]), "Pallas Chomp1d mismatch (tiled ragged path)"

    # 4) Column-tiled path where TL divides L_out exactly (no ragged edge).
    x4 = jax.random.normal(k4, (1, 8, 516), dtype=jnp.float32)
    out4 = jax.block_until_ready(chomp1d(x4, 4, target_block_bytes=4096))
    assert out4.shape == (1, 8, 512), out4.shape
    assert jnp.array_equal(out4, x4[:, :, :-4]), "Pallas Chomp1d mismatch (tiled exact path)"

    print("KERNEL_OK")
</pallas_src>

<mosaic_0001>
module attributes {stable_mosaic.version = 11 : i64} {
  func.func @_chomp_kernel(%arg0: i32, %arg1: memref<8x16xf32, #tpu.memory_space<vmem>>, %arg2: memref<8x14xf32, #tpu.memory_space<vmem>>) attributes {dimension_semantics = [#tpu.dimension_semantics<parallel>], iteration_bounds = array<i64: 1>, scalar_prefetch = 0 : i64, scratch_operands = 0 : i64, tpu.core_type = #tpu.core_type<tc>, window_params = [{transform_indices = @transform_0, window_bounds = array<i64: 8, 16>}, {transform_indices = @transform_1, window_bounds = array<i64: 8, 14>}]} {
    %c0 = arith.constant 0 : index
    %c0_0 = arith.constant 0 : index
    %0 = vector.load %arg1[%c0, %c0_0] : memref<8x16xf32, #tpu.memory_space<vmem>>, vector<8x14xf32>
    %c0_1 = arith.constant 0 : index
    %c0_2 = arith.constant 0 : index
    %1 = vector.load %arg2[%c0_1, %c0_2] : memref<8x14xf32, #tpu.memory_space<vmem>>, vector<8x14xf32>
    tpu.vector_store %arg2[%c0_1, %c0_2], %0 {strides = array<i32>} : memref<8x14xf32, #tpu.memory_space<vmem>>, vector<8x14xf32>,
    return
  }
  func.func @transform_0(%arg0: i32) -> (i32, i32) {
    %c0_i32 = arith.constant 0 : i32
    %c0_i32_0 = arith.constant 0 : i32
    return %arg0, %c0_i32 : i32, i32
  }
  func.func @transform_1(%arg0: i32) -> (i32, i32) {
    %c0_i32 = arith.constant 0 : i32
    %c0_i32_0 = arith.constant 0 : i32
    return %arg0, %c0_i32 : i32, i32
  }
}

</mosaic_0001>

<llo_original>
// kernel: tpu_custom_call.1
$region0: #{tpu_custom_call.1}
  #allocation0 [shape = 'u32[]', space=smem, size = 0x4, offset = 0x4, fixed_abs, tag = 'smem constant byte address 0x4 - core index']
  #allocation1 [shape = 'u32[72,128]{1,0:T(1,128)}', space=vmem, size = 0x9000, scoped, tag = 'internal scratch']
  %s0 = inlined_call_operand.hbm [shape: f32[8,16], index: 0, kind: input, shape index: {}]
  %s1 = inlined_call_operand.hbm [shape: f32[8,14], index: 1, kind: output, shape index: {}]
  %s2 = sld [smem:[#allocation0]]
  $region18: #{tpu_custom_call.1} parent=0
    _
  %s4 = ssub.s32 1, %s2
  %s5 = scalar_select 0, %s4, %s2
  $region1: #{tpu_custom_call.1} parent=0
    #allocation2 [shape = 'u8[4096]{0}', space=vmem, size = 0x1000, scoped, tag = 'input window, operand 0, single buffered']
    #allocation3 [shape = 's32[1]{0}', space=sflag, size = 0x4, scoped, tag = 'scoped memory for tpu_custom_call.1']
    #allocation4 [shape = 's32[1]{0}', space=sflag, size = 0x4, scoped, tag = 'scoped memory for tpu_custom_call.1']
    #allocation5 [shape = 'u8[4096]{0}', space=vmem, size = 0x1000, scoped, tag = 'output window, operand 0, single buffered']
    %6 = vsyncpa [#allocation3], 0
    %7 = vsyncpa [#allocation4], 0
    // Predicated region
    $region2: #{tpu_custom_call.1} parent=1 // pred_check
      _
    $region3: #{tpu_custom_call.1} parent=1 // pred_check_branch
      %9 = sbr.rel (0) target = $region5
    $region4: #{tpu_custom_call.1} parent=1 // pred_region
      %11 = vsyncadd [#allocation3], 0
      %s13 = sshll.u32 %s0, 4
      %s14 = int_to_ptr.hbm [resolvable:$true] %s13
      %s15 = sshll.u32 [#allocation2], 4
      %s16 = int_to_ptr.vmem [resolvable:$true] %s15
      %18 = dma.hbm_to_vmem [thread:$0]  %s14, 128, %s16, [#allocation3]
    $region5: #{tpu_custom_call.1} parent=1 // pred_fallthru
      _
    // Predicated region
    $region6: #{tpu_custom_call.1} parent=1 // pred_check
      _
    $region7: #{tpu_custom_call.1} parent=1 // pred_check_branch
      %20 = sbr.rel (0) target = $region9
    $region8: #{tpu_custom_call.1} parent=1 // pred_region
      %22 = dma.done [#allocation3], 128
    $region9: #{tpu_custom_call.1} parent=1 // pred_fallthru
      _
    %v23 = vld [vmem:[#allocation2] sm:$0xff]
    %vm24 = vcmask 113664
    %25 = vst.msk [vmem:[#allocation5] sm:$0xff] %vm24, %v23
    // Predicated region
    $region10: #{tpu_custom_call.1} parent=1 // pred_check
      _
    $region11: #{tpu_custom_call.1} parent=1 // pred_check_branch
      %27 = sbr.rel (0) target = $region13
    $region12: #{tpu_custom_call.1} parent=1 // pred_region
      %29 = vsyncadd [#allocation4], 0
      %s31 = sshll.u32 [#allocation5], 4
      %s32 = int_to_ptr.vmem [resolvable:$true] %s31
      %s33 = sshll.u32 %s1, 4
      %s34 = int_to_ptr.hbm [resolvable:$true] %s33
      %36 = dma.vmem_to_hbm [thread:$0]  %s32, 128, %s34, [#allocation4]
    $region13: #{tpu_custom_call.1} parent=1 // pred_fallthru
      _
    // Predicated region
    $region14: #{tpu_custom_call.1} parent=1 // pred_check
      _
    $region15: #{tpu_custom_call.1} parent=1 // pred_check_branch
      %38 = sbr.rel (0) target = $region17
    $region16: #{tpu_custom_call.1} parent=1 // pred_region
      %40 = dma.done [#allocation4], 128
    $region17: #{tpu_custom_call.1} parent=1 // pred_fallthru
      _
    %41 = vsyncpa [#allocation3], 1
    %42 = vsyncpa [#allocation4], 1

</llo_original>
